<compile_context>
chip_gen: v7x
topology: tpu7x:2x2x1
jax: 0.10.0
libtpu: 0.0.40
codegen_flags: <defaults>
</compile_context>

<pallas_src>
import functools

import jax
import jax.numpy as jnp
from jax import lax
from jax.experimental import pallas as pl
from jax.experimental.pallas import tpu as pltpu


# --------------------------------------------------------------------------------------
# Conv 3x3 (valid, stride 1) + bias + ReLU.  Grid = batch; im2col folded into the kernel.
# --------------------------------------------------------------------------------------

def _conv3x3_relu_kernel(x_ref, w_ref, b_ref, o_ref, *, Ho, Wo, Cin, Cout):
    # x_ref: [1, H, W, Cin] bf16    w_ref: [9, Cin, Cout] bf16
    # b_ref: [1, Cout]      f32     o_ref: [1, Ho, Wo, Cout] bf16
    bias = b_ref[...]                                            # [1, Cout] f32

    def row(h, carry):
        acc = jnp.zeros((Wo, Cout), jnp.float32)                 # f32 accumulator
        for ky in range(3):
            for kx in range(3):
                tap = x_ref[0, h + ky, kx:kx + Wo, :]            # [Wo, Cin]
                wk = w_ref[3 * ky + kx, :, :]                    # [Cin, Cout]
                if Cin == 1:
                    # K=1 contraction is cheaper as a VPU broadcast-multiply than an
                    # MXU matmul (per perf review: avoid tiny-K MXU pushes for conv1).
                    acc = acc + tap.astype(jnp.float32) * wk.astype(jnp.float32)
                else:
                    acc = acc + jnp.dot(tap, wk, preferred_element_type=jnp.float32)
        y = jnp.maximum(acc + bias, 0.0)                         # bias + ReLU in f32
        o_ref[0, h, :, :] = y.astype(o_ref.dtype)
        return carry

    lax.fori_loop(0, Ho, row, 0)


def conv3x3_relu(x, w9, b):
    N, H, W, Cin = x.shape
    Cout = w9.shape[-1]
    Ho, Wo = H - 2, W - 2
    kernel = functools.partial(_conv3x3_relu_kernel, Ho=Ho, Wo=Wo, Cin=Cin, Cout=Cout)
    return pl.pallas_call(
        kernel,
        out_shape=jax.ShapeDtypeStruct((N, Ho, Wo, Cout), x.dtype),
        grid=(N,),
        in_specs=[
            pl.BlockSpec((1, H, W, Cin), lambda n: (n, 0, 0, 0)),
            pl.BlockSpec((9, Cin, Cout), lambda n: (0, 0, 0)),   # weights stay resident
            pl.BlockSpec((1, Cout), lambda n: (0, 0)),
        ],
        out_specs=pl.BlockSpec((1, Ho, Wo, Cout), lambda n: (n, 0, 0, 0)),
        compiler_params=pltpu.CompilerParams(dimension_semantics=("parallel",)),
    )(x, w9, b)


# --------------------------------------------------------------------------------------
# MaxPool 2x2 stride 2.  W-pairs are packed into the lane dim via a free host reshape,
# so the kernel only needs leading-dim indexing and lane-dim slicing (no strided copies).
# --------------------------------------------------------------------------------------

def _maxpool2x2_kernel(x_ref, o_ref, *, Hp, Wp, C):
    # x_ref: [1, 2*Hp, Wp, 2*C]   o_ref: [1, Hp, Wp, C]
    for hp in range(Hp):
        v = jnp.maximum(x_ref[0, 2 * hp, :, :], x_ref[0, 2 * hp + 1, :, :])  # [Wp, 2C]
        o_ref[0, hp, :, :] = jnp.maximum(v[:, :C], v[:, C:])                 # W-pair max


def maxpool2x2(x):
    N, H, W, C = x.shape
    Hp, Wp = H // 2, W // 2
    xp = x.reshape(N, H, Wp, 2 * C)        # pure metadata reshape (row-major contiguous)
    kernel = functools.partial(_maxpool2x2_kernel, Hp=Hp, Wp=Wp, C=C)
    return pl.pallas_call(
        kernel,
        out_shape=jax.ShapeDtypeStruct((N, Hp, Wp, C), x.dtype),
        grid=(N,),
        in_specs=[pl.BlockSpec((1, H, Wp, 2 * C), lambda n: (n, 0, 0, 0))],
        out_specs=pl.BlockSpec((1, Hp, Wp, C), lambda n: (n, 0, 0, 0)),
        compiler_params=pltpu.CompilerParams(dimension_semantics=("parallel",)),
    )(xp)


# --------------------------------------------------------------------------------------
# Fused FC head: fc1 + bias + ReLU -> dropout(p=0.5) -> fc2 + bias + ReLU, one pallas_call,
# gridded over M rows; both weight matrices resident in VMEM (~0.5 MB bf16).
# --------------------------------------------------------------------------------------

def _fc_head_kernel(x_ref, w1_ref, b1_ref, drop_ref, w2_ref, b2_ref, o_ref):
    h = jnp.dot(x_ref[...], w1_ref[...], preferred_element_type=jnp.float32)
    h = jnp.maximum(h + b1_ref[...], 0.0)          # fc1 bias + ReLU (f32 epilogue)
    h = h * drop_ref[...]                          # dropout: mask holds 0.0 or 1/(1-p)=2.0
    h = h.astype(w2_ref.dtype)                     # bf16 for the second MXU matmul
    y = jnp.dot(h, w2_ref[...], preferred_element_type=jnp.float32)
    y = jnp.maximum(y + b2_ref[...], 0.0)          # fc2 bias + final ReLU (per reference)
    o_ref[...] = y.astype(o_ref.dtype)


def fc_head(x, w1, b1, drop_scale, w2, b2, *, block_m=128):
    M, K = x.shape
    H1 = w1.shape[1]
    NO = w2.shape[1]
    tm = M if M <= block_m else block_m            # small batches: one full block
    grid = (pl.cdiv(M, tm),)
    return pl.pallas_call(
        _fc_head_kernel,
        out_shape=jax.ShapeDtypeStruct((M, NO), jnp.float32),
        grid=grid,
        in_specs=[
            pl.BlockSpec((tm, K), lambda i: (i, 0)),
            pl.BlockSpec((K, H1), lambda i: (0, 0)),     # fc1 weights resident
            pl.BlockSpec((1, H1), lambda i: (0, 0)),
            pl.BlockSpec((tm, H1), lambda i: (i, 0)),    # dropout scale, row-tiled with x
            pl.BlockSpec((H1, NO), lambda i: (0, 0)),    # fc2 weights resident
            pl.BlockSpec((1, NO), lambda i: (0, 0)),
        ],
        out_specs=pl.BlockSpec((tm, NO), lambda i: (i, 0)),
        compiler_params=pltpu.CompilerParams(dimension_semantics=("parallel",)),
    )(x, w1, b1, drop_scale, w2, b2)


# --------------------------------------------------------------------------------------
# Parameters & forward pass
# --------------------------------------------------------------------------------------

def init_params(key):
    ks = jax.random.split(key, 12)
    s = 0.05
    bf = jnp.bfloat16

    def conv_w(k, cin, cout):          # stored as [kh*kw, Cin, Cout], bf16
        return (jax.random.normal(k, (9, cin, cout), jnp.float32) * s).astype(bf)

    return {
        "conv1_w": conv_w(ks[0], 1, 32),
        "conv1_b": jax.random.normal(ks[1], (1, 32), jnp.float32) * s,
        "conv2_w": conv_w(ks[2], 32, 32),
        "conv2_b": jax.random.normal(ks[3], (1, 32), jnp.float32) * s,
        "conv3_w": conv_w(ks[4], 32, 64),
        "conv3_b": jax.random.normal(ks[5], (1, 64), jnp.float32) * s,
        "conv4_w": conv_w(ks[6], 64, 64),
        "conv4_b": jax.random.normal(ks[7], (1, 64), jnp.float32) * s,
        "fc1_w": (jax.random.normal(ks[8], (4 * 4 * 64, 200), jnp.float32) * s).astype(bf),
        "fc1_b": jax.random.normal(ks[9], (1, 200), jnp.float32) * s,
        "fc2_w": (jax.random.normal(ks[10], (200, 10), jnp.float32) * s).astype(bf),
        "fc2_b": jax.random.normal(ks[11], (1, 10), jnp.float32) * s,
    }


def mnist_forward(params, x_nchw, *, dropout_key=None, training=True):
    N, C, H, W = x_nchw.shape
    assert C == 1, "MNIST_Model expects 1 input channel"
    # NCHW with C=1 -> NHWC is a pure reshape (no transpose), per perf review.
    x = x_nchw.reshape(N, H, W, 1).astype(jnp.bfloat16)

    x = conv3x3_relu(x, params["conv1_w"], params["conv1_b"])   # [N, 26, 26, 32]
    x = conv3x3_relu(x, params["conv2_w"], params["conv2_b"])   # [N, 24, 24, 32]
    x = maxpool2x2(x)                                           # [N, 12, 12, 32]
    x = conv3x3_relu(x, params["conv3_w"], params["conv3_b"])   # [N, 10, 10, 64]
    x = conv3x3_relu(x, params["conv4_w"], params["conv4_b"])   # [N,  8,  8, 64]
    x = maxpool2x2(x)                                           # [N,  4,  4, 64]
    # PyTorch: permute(0,2,3,1).view(-1, 4*4*64) — already NHWC, plain reshape.
    x = x.reshape(N, 4 * 4 * 64)                                # [N, 1024]

    # Dropout p=0.5 (F.dropout default training=True), inverted scaling by 2.
    # Mask is drawn with jax.random on the host (pltpu.prng_* has no CPU/interpret
    # lowering, which crashed the previous kernel) and applied inside the fused FC kernel.
    # TODO(synk): torch's F.dropout uses torch RNG; the mask cannot match bit-for-bit.
    h1 = params["fc1_b"].shape[-1]
    if training:
        if dropout_key is None:
            dropout_key = jax.random.PRNGKey(0)
        keep = jax.random.bernoulli(dropout_key, 0.5, (N, h1))
        drop = keep.astype(jnp.float32) * 2.0
    else:
        drop = jnp.ones((N, h1), jnp.float32)

    return fc_head(x, params["fc1_w"], params["fc1_b"], drop,
                   params["fc2_w"], params["fc2_b"])            # [N, 10], f32


if __name__ == "__main__":
    key = jax.random.PRNGKey(0)
    pkey, xkey, dkey = jax.random.split(key, 3)
    params = init_params(pkey)
    # fc1 expects 4*4*64, so the module fixes the input to 1x28x28 (MNIST).
    x = jax.random.normal(xkey, (2, 1, 28, 28), jnp.float32)    # NCHW like PyTorch
    out = mnist_forward(params, x, dropout_key=dkey, training=True)
    out = jax.block_until_ready(out)
    assert out.shape == (2, 10), out.shape
    assert bool(jnp.all(out >= 0.0))   # final ReLU per the reference module
    print("KERNEL_OK")
</pallas_src>

<mosaic_0001>
module attributes {stable_mosaic.version = 11 : i64} {
  func.func @_conv3x3_relu_kernel(%arg0: i32, %arg1: memref<1x28x28x1xbf16, #tpu.memory_space<vmem>>, %arg2: memref<9x1x32xbf16, #tpu.memory_space<vmem>>, %arg3: memref<1x32xf32, #tpu.memory_space<vmem>>, %arg4: memref<1x26x26x32xbf16, #tpu.memory_space<vmem>>) attributes {dimension_semantics = [#tpu.dimension_semantics<parallel>], iteration_bounds = array<i64: 2>, scalar_prefetch = 0 : i64, scratch_operands = 0 : i64, tpu.core_type = #tpu.core_type<tc>, window_params = [{transform_indices = @transform_0, window_bounds = array<i64: 1, 28, 28, 1>}, {pipeline_mode = #tpu.pipeline_mode<synchronous>, transform_indices = @transform_1, window_bounds = array<i64: 9, 1, 32>}, {pipeline_mode = #tpu.pipeline_mode<synchronous>, transform_indices = @transform_2, window_bounds = array<i64: 1, 32>}, {transform_indices = @transform_3, window_bounds = array<i64: 1, 26, 26, 32>}]} {
    %c0 = arith.constant 0 : index
    %c0_0 = arith.constant 0 : index
    %0 = vector.load %arg3[%c0, %c0_0] : memref<1x32xf32, #tpu.memory_space<vmem>>, vector<1x32xf32>
    %c0_i32 = arith.constant 0 : i32
    %c26_i32 = arith.constant 26 : i32
    %1 = arith.addi %c0_i32, %c26_i32 : i32
    %c1_i32 = arith.constant 1 : i32
    scf.for %arg5 = %c0_i32 to %1 step %c1_i32  : i32 {
      %cst = arith.constant 0.000000e+00 : f32
      %2 = vector.broadcast %cst : f32 to vector<26x32xf32>
      %c0_i32_2 = arith.constant 0 : i32
      %3 = arith.addi %arg5, %c0_i32_2 : i32
      %c0_3 = arith.constant 0 : index
      %4 = arith.index_cast %3 : i32 to index
      %c0_4 = arith.constant 0 : index
      %c0_5 = arith.constant 0 : index
      %5 = vector.load %arg1[%c0_3, %4, %c0_4, %c0_5] : memref<1x28x28x1xbf16, #tpu.memory_space<vmem>>, vector<1x1x26x1xbf16>
      %6 = vector.shape_cast %5 : vector<1x1x26x1xbf16> to vector<26x1xbf16>
      %c0_6 = arith.constant 0 : index
      %c0_7 = arith.constant 0 : index
      %c0_8 = arith.constant 0 : index
      %7 = vector.load %arg2[%c0_6, %c0_7, %c0_8] : memref<9x1x32xbf16, #tpu.memory_space<vmem>>, vector<1x1x32xbf16>
      %8 = vector.shape_cast %7 : vector<1x1x32xbf16> to vector<1x32xbf16>
      %9 = arith.extf %6 : vector<26x1xbf16> to vector<26x1xf32>
      %10 = arith.extf %8 : vector<1x32xbf16> to vector<1x32xf32>
      %11 = vector.broadcast %9 : vector<26x1xf32> to vector<26x32xf32>
      %12 = vector.broadcast %10 : vector<1x32xf32> to vector<26x32xf32>
      %13 = arith.mulf %11, %12 : vector<26x32xf32>
      %14 = arith.addf %2, %13 : vector<26x32xf32>
      %c0_i32_9 = arith.constant 0 : i32
      %15 = arith.addi %arg5, %c0_i32_9 : i32
      %c0_10 = arith.constant 0 : index
      %16 = arith.index_cast %15 : i32 to index
      %c1 = arith.constant 1 : index
      %c0_11 = arith.constant 0 : index
      %17 = vector.load %arg1[%c0_10, %16, %c1, %c0_11] : memref<1x28x28x1xbf16, #tpu.memory_space<vmem>>, vector<1x1x26x1xbf16>
      %18 = vector.shape_cast %17 : vector<1x1x26x1xbf16> to vector<26x1xbf16>
      %c1_12 = arith.constant 1 : index
      %c0_13 = arith.constant 0 : index
      %c0_14 = arith.constant 0 : index
      %19 = vector.load %arg2[%c1_12, %c0_13, %c0_14] : memref<9x1x32xbf16, #tpu.memory_space<vmem>>, vector<1x1x32xbf16>
      %20 = vector.shape_cast %19 : vector<1x1x32xbf16> to vector<1x32xbf16>
      %21 = arith.extf %18 : vector<26x1xbf16> to vector<26x1xf32>
      %22 = arith.extf %20 : vector<1x32xbf16> to vector<1x32xf32>
      %23 = vector.broadcast %21 : vector<26x1xf32> to vector<26x32xf32>
      %24 = vector.broadcast %22 : vector<1x32xf32> to vector<26x32xf32>
      %25 = arith.mulf %23, %24 : vector<26x32xf32>
      %26 = arith.addf %14, %25 : vector<26x32xf32>
      %c0_i32_15 = arith.constant 0 : i32
      %27 = arith.addi %arg5, %c0_i32_15 : i32
      %c0_16 = arith.constant 0 : index
      %28 = arith.index_cast %27 : i32 to index
      %c2 = arith.constant 2 : index
      %c0_17 = arith.constant 0 : index
      %29 = vector.load %arg1[%c0_16, %28, %c2, %c0_17] : memref<1x28x28x1xbf16, #tpu.memory_space<vmem>>, vector<1x1x26x1xbf16>
      %30 = vector.shape_cast %29 : vector<1x1x26x1xbf16> to vector<26x1xbf16>
      %c2_18 = arith.constant 2 : index
      %c0_19 = arith.constant 0 : index
      %c0_20 = arith.constant 0 : index
      %31 = vector.load %arg2[%c2_18, %c0_19, %c0_20] : memref<9x1x32xbf16, #tpu.memory_space<vmem>>, vector<1x1x32xbf16>
      %32 = vector.shape_cast %31 : vector<1x1x32xbf16> to vector<1x32xbf16>
      %33 = arith.extf %30 : vector<26x1xbf16> to vector<26x1xf32>
      %34 = arith.extf %32 : vector<1x32xbf16> to vector<1x32xf32>
      %35 = vector.broadcast %33 : vector<26x1xf32> to vector<26x32xf32>
      %36 = vector.broadcast %34 : vector<1x32xf32> to vector<26x32xf32>
      %37 = arith.mulf %35, %36 : vector<26x32xf32>
      %38 = arith.addf %26, %37 : vector<26x32xf32>
      %c1_i32_21 = arith.constant 1 : i32
      %39 = arith.addi %arg5, %c1_i32_21 : i32
      %c0_22 = arith.constant 0 : index
      %40 = arith.index_cast %39 : i32 to index
      %c0_23 = arith.constant 0 : index
      %c0_24 = arith.constant 0 : index
      %41 = vector.load %arg1[%c0_22, %40, %c0_23, %c0_24] : memref<1x28x28x1xbf16, #tpu.memory_space<vmem>>, vector<1x1x26x1xbf16>
      %42 = vector.shape_cast %41 : vector<1x1x26x1xbf16> to vector<26x1xbf16>
      %c3 = arith.constant 3 : index
      %c0_25 = arith.constant 0 : index
      %c0_26 = arith.constant 0 : index
      %43 = vector.load %arg2[%c3, %c0_25, %c0_26] : memref<9x1x32xbf16, #tpu.memory_space<vmem>>, vector<1x1x32xbf16>
      %44 = vector.shape_cast %43 : vector<1x1x32xbf16> to vector<1x32xbf16>
      %45 = arith.extf %42 : vector<26x1xbf16> to vector<26x1xf32>
      %46 = arith.extf %44 : vector<1x32xbf16> to vector<1x32xf32>
      %47 = vector.broadcast %45 : vector<26x1xf32> to vector<26x32xf32>
      %48 = vector.broadcast %46 : vector<1x32xf32> to vector<26x32xf32>
      %49 = arith.mulf %47, %48 : vector<26x32xf32>
      %50 = arith.addf %38, %49 : vector<26x32xf32>
      %c1_i32_27 = arith.constant 1 : i32
      %51 = arith.addi %arg5, %c1_i32_27 : i32
      %c0_28 = arith.constant 0 : index
      %52 = arith.index_cast %51 : i32 to index
      %c1_29 = arith.constant 1 : index
      %c0_30 = arith.constant 0 : index
      %53 = vector.load %arg1[%c0_28, %52, %c1_29, %c0_30] : memref<1x28x28x1xbf16, #tpu.memory_space<vmem>>, vector<1x1x26x1xbf16>
      %54 = vector.shape_cast %53 : vector<1x1x26x1xbf16> to vector<26x1xbf16>
      %c4 = arith.constant 4 : index
      %c0_31 = arith.constant 0 : index
      %c0_32 = arith.constant 0 : index
      %55 = vector.load %arg2[%c4, %c0_31, %c0_32] : memref<9x1x32xbf16, #tpu.memory_space<vmem>>, vector<1x1x32xbf16>
      %56 = vector.shape_cast %55 : vector<1x1x32xbf16> to vector<1x32xbf16>
      %57 = arith.extf %54 : vector<26x1xbf16> to vector<26x1xf32>
      %58 = arith.extf %56 : vector<1x32xbf16> to vector<1x32xf32>
      %59 = vector.broadcast %57 : vector<26x1xf32> to vector<26x32xf32>
      %60 = vector.broadcast %58 : vector<1x32xf32> to vector<26x32xf32>
      %61 = arith.mulf %59, %60 : vector<26x32xf32>
      %62 = arith.addf %50, %61 : vector<26x32xf32>
      %c1_i32_33 = arith.constant 1 : i32
      %63 = arith.addi %arg5, %c1_i32_33 : i32
      %c0_34 = arith.constant 0 : index
      %64 = arith.index_cast %63 : i32 to index
      %c2_35 = arith.constant 2 : index
      %c0_36 = arith.constant 0 : index
      %65 = vector.load %arg1[%c0_34, %64, %c2_35, %c0_36] : memref<1x28x28x1xbf16, #tpu.memory_space<vmem>>, vector<1x1x26x1xbf16>
      %66 = vector.shape_cast %65 : vector<1x1x26x1xbf16> to vector<26x1xbf16>
      %c5 = arith.constant 5 : index
      %c0_37 = arith.constant 0 : index
      %c0_38 = arith.constant 0 : index
      %67 = vector.load %arg2[%c5, %c0_37, %c0_38] : memref<9x1x32xbf16, #tpu.memory_space<vmem>>, vector<1x1x32xbf16>
      %68 = vector.shape_cast %67 : vector<1x1x32xbf16> to vector<1x32xbf16>
      %69 = arith.extf %66 : vector<26x1xbf16> to vector<26x1xf32>
      %70 = arith.extf %68 : vector<1x32xbf16> to vector<1x32xf32>
      %71 = vector.broadcast %69 : vector<26x1xf32> to vector<26x32xf32>
      %72 = vector.broadcast %70 : vector<1x32xf32> to vector<26x32xf32>
      %73 = arith.mulf %71, %72 : vector<26x32xf32>
      %74 = arith.addf %62, %73 : vector<26x32xf32>
      %c2_i32 = arith.constant 2 : i32
      %75 = arith.addi %arg5, %c2_i32 : i32
      %c0_39 = arith.constant 0 : index
      %76 = arith.index_cast %75 : i32 to index
      %c0_40 = arith.constant 0 : index
      %c0_41 = arith.constant 0 : index
      %77 = vector.load %arg1[%c0_39, %76, %c0_40, %c0_41] : memref<1x28x28x1xbf16, #tpu.memory_space<vmem>>, vector<1x1x26x1xbf16>
      %78 = vector.shape_cast %77 : vector<1x1x26x1xbf16> to vector<26x1xbf16>
      %c6 = arith.constant 6 : index
      %c0_42 = arith.constant 0 : index
      %c0_43 = arith.constant 0 : index
      %79 = vector.load %arg2[%c6, %c0_42, %c0_43] : memref<9x1x32xbf16, #tpu.memory_space<vmem>>, vector<1x1x32xbf16>
      %80 = vector.shape_cast %79 : vector<1x1x32xbf16> to vector<1x32xbf16>
      %81 = arith.extf %78 : vector<26x1xbf16> to vector<26x1xf32>
      %82 = arith.extf %80 : vector<1x32xbf16> to vector<1x32xf32>
      %83 = vector.broadcast %81 : vector<26x1xf32> to vector<26x32xf32>
      %84 = vector.broadcast %82 : vector<1x32xf32> to vector<26x32xf32>
      %85 = arith.mulf %83, %84 : vector<26x32xf32>
      %86 = arith.addf %74, %85 : vector<26x32xf32>
      %c2_i32_44 = arith.constant 2 : i32
      %87 = arith.addi %arg5, %c2_i32_44 : i32
      %c0_45 = arith.constant 0 : index
      %88 = arith.index_cast %87 : i32 to index
      %c1_46 = arith.constant 1 : index
      %c0_47 = arith.constant 0 : index
      %89 = vector.load %arg1[%c0_45, %88, %c1_46, %c0_47] : memref<1x28x28x1xbf16, #tpu.memory_space<vmem>>, vector<1x1x26x1xbf16>
      %90 = vector.shape_cast %89 : vector<1x1x26x1xbf16> to vector<26x1xbf16>
      %c7 = arith.constant 7 : index
      %c0_48 = arith.constant 0 : index
      %c0_49 = arith.constant 0 : index
      %91 = vector.load %arg2[%c7, %c0_48, %c0_49] : memref<9x1x32xbf16, #tpu.memory_space<vmem>>, vector<1x1x32xbf16>
      %92 = vector.shape_cast %91 : vector<1x1x32xbf16> to vector<1x32xbf16>
      %93 = arith.extf %90 : vector<26x1xbf16> to vector<26x1xf32>
      %94 = arith.extf %92 : vector<1x32xbf16> to vector<1x32xf32>
      %95 = vector.broadcast %93 : vector<26x1xf32> to vector<26x32xf32>
      %96 = vector.broadcast %94 : vector<1x32xf32> to vector<26x32xf32>
      %97 = arith.mulf %95, %96 : vector<26x32xf32>
      %98 = arith.addf %86, %97 : vector<26x32xf32>
      %c2_i32_50 = arith.constant 2 : i32
      %99 = arith.addi %arg5, %c2_i32_50 : i32
      %c0_51 = arith.constant 0 : index
      %100 = arith.index_cast %99 : i32 to index
      %c2_52 = arith.constant 2 : index
      %c0_53 = arith.constant 0 : index
      %101 = vector.load %arg1[%c0_51, %100, %c2_52, %c0_53] : memref<1x28x28x1xbf16, #tpu.memory_space<vmem>>, vector<1x1x26x1xbf16>
      %102 = vector.shape_cast %101 : vector<1x1x26x1xbf16> to vector<26x1xbf16>
      %c8 = arith.constant 8 : index
      %c0_54 = arith.constant 0 : index
      %c0_55 = arith.constant 0 : index
      %103 = vector.load %arg2[%c8, %c0_54, %c0_55] : memref<9x1x32xbf16, #tpu.memory_space<vmem>>, vector<1x1x32xbf16>
      %104 = vector.shape_cast %103 : vector<1x1x32xbf16> to vector<1x32xbf16>
      %105 = arith.extf %102 : vector<26x1xbf16> to vector<26x1xf32>
      %106 = arith.extf %104 : vector<1x32xbf16> to vector<1x32xf32>
      %107 = vector.broadcast %105 : vector<26x1xf32> to vector<26x32xf32>
      %108 = vector.broadcast %106 : vector<1x32xf32> to vector<26x32xf32>
      %109 = arith.mulf %107, %108 : vector<26x32xf32>
      %110 = arith.addf %98, %109 : vector<26x32xf32>
      %111 = vector.broadcast %0 : vector<1x32xf32> to vector<26x32xf32>
      %112 = arith.addf %110, %111 : vector<26x32xf32>
      %cst_56 = arith.constant 0.000000e+00 : f32
      %113 = vector.broadcast %cst_56 : f32 to vector<26x32xf32>
      %114 = arith.maximumf %112, %113 : vector<26x32xf32>
      %115 = arith.truncf %114 : vector<26x32xf32> to vector<26x32xbf16>
      %c0_57 = arith.constant 0 : index
      %116 = arith.index_cast %arg5 : i32 to index
      %c0_58 = arith.constant 0 : index
      %c0_59 = arith.constant 0 : index
      %117 = vector.load %arg4[%c0_57, %116, %c0_58, %c0_59] : memref<1x26x26x32xbf16, #tpu.memory_space<vmem>>, vector<1x1x26x32xbf16>
      %118 = vector.shape_cast %117 : vector<1x1x26x32xbf16> to vector<26x32xbf16>
      %119 = vector.shape_cast %115 : vector<26x32xbf16> to vector<1x1x26x32xbf16>
      tpu.vector_store %arg4[%c0_57, %116, %c0_58, %c0_59], %119 {strides = array<i32>} : memref<1x26x26x32xbf16, #tpu.memory_space<vmem>>, vector<1x1x26x32xbf16>,
    }
    %c26_i32_1 = arith.constant 26 : i32
    return
  }
  func.func @transform_0(%arg0: i32) -> (i32, i32, i32, i32) {
    %c0_i32 = arith.constant 0 : i32
    %c0_i32_0 = arith.constant 0 : i32
    %c0_i32_1 = arith.constant 0 : i32
    %c0_i32_2 = arith.constant 0 : i32
    return %arg0, %c0_i32, %c0_i32_0, %c0_i32_1 : i32, i32, i32, i32
  }
  func.func @transform_1(%arg0: i32) -> (i32, i32, i32) {
    %c0_i32 = arith.constant 0 : i32
    %c0_i32_0 = arith.constant 0 : i32
    %c0_i32_1 = arith.constant 0 : i32
    %c0_i32_2 = arith.constant 0 : i32
    return %c0_i32, %c0_i32_0, %c0_i32_1 : i32, i32, i32
  }
  func.func @transform_2(%arg0: i32) -> (i32, i32) {
    %c0_i32 = arith.constant 0 : i32
    %c0_i32_0 = arith.constant 0 : i32
    %c0_i32_1 = arith.constant 0 : i32
    return %c0_i32, %c0_i32_0 : i32, i32
  }
  func.func @transform_3(%arg0: i32) -> (i32, i32, i32, i32) {
    %c0_i32 = arith.constant 0 : i32
    %c0_i32_0 = arith.constant 0 : i32
    %c0_i32_1 = arith.constant 0 : i32
    %c0_i32_2 = arith.constant 0 : i32
    return %arg0, %c0_i32, %c0_i32_0, %c0_i32_1 : i32, i32, i32, i32
  }
}

</mosaic_0001>

<llo_original>
// kernel: tpu_custom_call.1
$region0: #{tpu_custom_call.1}
  #allocation0 [shape = 'u32[]', space=smem, size = 0x4, offset = 0x4, fixed_abs, tag = 'smem constant byte address 0x4 - core index']
  #allocation1 [shape = 'u32[144,128]{1,0:T(1,128)}', space=vmem, size = 0x12000, scoped, tag = 'internal scratch']
  %s0 = inlined_call_operand.vmem [shape: bf16[2,28,28,1], index: 0, kind: input, shape index: {}]
  %s1 = inlined_call_operand.vmem [shape: bf16[9,1,32], index: 1, kind: input, shape index: {}]
  %s2 = inlined_call_operand.vmem [shape: f32[1,32], index: 2, kind: input, shape index: {}]
  %s3 = inlined_call_operand.vmem [shape: bf16[2,26,26,32], index: 3, kind: output, shape index: {}]
  %s4 = sld [smem:[#allocation0]]
  $region52: #{tpu_custom_call.1} parent=0
    _
  %s6 = ssub.s32 1, %s4
  %s7 = scalar_select 0, %s6, %s4
  loop: start=0, step=1, limit=4
  $region2: #{tpu_custom_call.1} parent=0 // loop_pre_header
    _
  $region3: #{tpu_custom_call.1} parent=0 // loop_header
    %s9 = sphi 0, %s13
    %p10 = scmp.ge.s32.totalorder %s9, 4
    %s19 = sphi 0, %s21
    %s22 = sphi 0, %s19
    %s23 = sphi 0, %s22
    %s39 = sphi 0, %s23
    %s43 = sphi 0, %s43
    %s45 = sphi 0, %s43
    %s46 = sphi 0, %s45
    %s60 = sphi 0, %s46
    %s64 = sphi 0, %s64
    %s66 = sphi 0, %s64
    %s67 = sphi 0, %s66
    %s81 = sphi 0, %s67
    %s87 = sphi 0, %s89
    %s90 = sphi 0, %s87
    %s91 = sphi 0, %s90
    %s107 = sphi 0, %s91
  $region4: #{tpu_custom_call.1} parent=0 // loop_header_branch
    %12 = sbr.rel (%p10) target = $region8
  $region5: #{tpu_custom_call.1} parent=0 // loop_body
    %s14 = ssub.s32 %s9, 1
    %s15 = ssub.s32 %s9, 2
    %s16 = sadd.s32 %s9, 1
    %s17 = ssub.s32 %s9, %s16
    %p18 = scmp.eq.s32.totalorder %s17, 0
    %s20 = sadd.s32 %s19, 1
    %s21 = scalar_select %p18, %s19, %s20
    %p24 = pneg %p18
    %p25 = scmp.eq.s32.totalorder %s9, 1
    %p26 = por %p24, %p25
    %p27 = scmp.ne.s32.totalorder %s19, %s22
    %p28 = scmp.eq.s32.totalorder %s9, 0
    %p29 = por %p27, %p28
    %p30 = scmp.ne.s32.totalorder %s19, %s22
    %p31 = scmp.eq.s32.totalorder %s14, 1
    %p32 = por %p30, %p31
    %p33 = scmp.ne.s32.totalorder %s22, %s23
    %p34 = scmp.eq.s32.totalorder %s14, 0
    %p35 = por %p33, %p34
    %p36 = scmp.ne.s32.totalorder %s22, %s23
    %p37 = scmp.eq.s32.totalorder %s15, 1
    %p38 = por %p36, %p37
    %p40 = scmp.ne.s32.totalorder %s23, %s39
    %p41 = scmp.eq.s32.totalorder %s15, 0
    %p42 = por %p40, %p41
    %s44 = sadd.s32 %s43, 1
    %p47 = scmp.eq.s32.totalorder %s9, 1
    %p48 = scmp.ne.s32.totalorder %s43, %s45
    %p49 = scmp.eq.s32.totalorder %s9, 0
    %p50 = por %p48, %p49
    %p51 = scmp.ne.s32.totalorder %s43, %s45
    %p52 = scmp.eq.s32.totalorder %s14, 1
    %p53 = por %p51, %p52
    %p54 = scmp.ne.s32.totalorder %s45, %s46
    %p55 = scmp.eq.s32.totalorder %s14, 0
    %p56 = por %p54, %p55
    %p57 = scmp.ne.s32.totalorder %s45, %s46
    %p58 = scmp.eq.s32.totalorder %s15, 1
    %p59 = por %p57, %p58
    %p61 = scmp.ne.s32.totalorder %s46, %s60
    %p62 = scmp.eq.s32.totalorder %s15, 0
    %p63 = por %p61, %p62
    %s65 = sadd.s32 %s64, 1
    %p68 = scmp.eq.s32.totalorder %s9, 1
    %p69 = scmp.ne.s32.totalorder %s64, %s66
    %p70 = scmp.eq.s32.totalorder %s9, 0
    %p71 = por %p69, %p70
    %p72 = scmp.ne.s32.totalorder %s64, %s66
    %p73 = scmp.eq.s32.totalorder %s14, 1
    %p74 = por %p72, %p73
    %p75 = scmp.ne.s32.totalorder %s66, %s67
    %p76 = scmp.eq.s32.totalorder %s14, 0
    %p77 = por %p75, %p76
    %p78 = scmp.ne.s32.totalorder %s66, %s67
    %p79 = scmp.eq.s32.totalorder %s15, 1
    %p80 = por %p78, %p79
    %p82 = scmp.ne.s32.totalorder %s67, %s81
    %p83 = scmp.eq.s32.totalorder %s15, 0
    %p84 = por %p82, %p83
    %s85 = ssub.s32 %s9, %s16
    %p86 = scmp.eq.s32.totalorder %s85, 0
    %s88 = sadd.s32 %s87, 1
    %s89 = scalar_select %p86, %s87, %s88
    %p92 = pneg %p86
    %p93 = scmp.eq.s32.totalorder %s9, 1
    %p94 = por %p92, %p93
    %p95 = scmp.ne.s32.totalorder %s87, %s90
    %p96 = scmp.eq.s32.totalorder %s9, 0
    %p97 = por %p95, %p96
    %p98 = scmp.ne.s32.totalorder %s87, %s90
    %p99 = scmp.eq.s32.totalorder %s14, 1
    %p100 = por %p98, %p99
    %p101 = scmp.ne.s32.totalorder %s90, %s91
    %p102 = scmp.eq.s32.totalorder %s14, 0
    %p103 = por %p101, %p102
    %p104 = scmp.ne.s32.totalorder %s90, %s91
    %p105 = scmp.eq.s32.totalorder %s15, 1
    %p106 = por %p104, %p105
    %p108 = scmp.ne.s32.totalorder %s91, %s107
    %p109 = scmp.eq.s32.totalorder %s15, 0
    %p110 = por %p108, %p109
    %p111 = scmp.le.s32.totalorder 1, %s9
    %p112 = scmp.lt.s32.totalorder %s9, 3
    %p113 = pnand %p111, %p112
    %p114 = pneg %p113
    // Predicated region
    $region9: #{tpu_custom_call.1} parent=5 // pred_check
      _
    $region10: #{tpu_custom_call.1} parent=5 // pred_check_branch
      %116 = sbr.rel (%p113) target = $region12
    $region11: #{tpu_custom_call.1} parent=5 // pred_region
      %s117 = ssub.s32 %s9, 1
      // Predicated region
      $region13: #{tpu_custom_call.1} parent=11 // pred_check
        %p118 = pneg %p56
      $region14: #{tpu_custom_call.1} parent=11 // pred_check_branch
        %120 = sbr.rel (%p118) target = $region16
      $region15: #{tpu_custom_call.1} parent=11 // pred_region
        _
      $region16: #{tpu_custom_call.1} parent=11 // pred_fallthru
        _
      // Predicated region
      $region17: #{tpu_custom_call.1} parent=11 // pred_check
        %p121 = pneg %p77
      $region18: #{tpu_custom_call.1} parent=11 // pred_check_branch
        %123 = sbr.rel (%p121) target = $region20
      $region19: #{tpu_custom_call.1} parent=11 // pred_region
        _
      $region20: #{tpu_custom_call.1} parent=11 // pred_fallthru
        _
    $region12: #{tpu_custom_call.1} parent=5 // pred_fallthru
      _
    %p124 = scmp.lt.s32.totalorder %s9, 2
    // Predicated region
    $region21: #{tpu_custom_call.1} parent=5 // pred_check
      %p125 = pneg %p124
    $region22: #{tpu_custom_call.1} parent=5 // pred_check_branch
      %127 = sbr.rel (%p125) target = $region24
    $region23: #{tpu_custom_call.1} parent=5 // pred_region
      // Predicated region
      $region25: #{tpu_custom_call.1} parent=23 // pred_check
        %p128 = pneg %p29
      $region26: #{tpu_custom_call.1} parent=23 // pred_check_branch
        %130 = sbr.rel (%p128) target = $region28
      $region27: #{tpu_custom_call.1} parent=23 // pred_region
        %p131 = scmp.lt.s32.totalorder %s9, 1
        %s132 = scalar_select %p131, %s9, 1
        %s133 = smul.addr %s132, 112
        %s134 = smul.addr %s133, 4
        %s135 = scalar_lea.vmem %s0, %s134
      $region28: #{tpu_custom_call.1} parent=23 // pred_fallthru
        _
    $region24: #{tpu_custom_call.1} parent=5 // pred_fallthru
      _
    %p136 = scmp.le.s32.totalorder 1, %s9
    %p137 = scmp.lt.s32.totalorder %s9, 3
    %p138 = pnand %p136, %p137
    %p139 = pneg %p138
    // Predicated region
    $region29: #{tpu_custom_call.1} parent=5 // pred_check
      _
    $region30: #{tpu_custom_call.1} parent=5 // pred_check_branch
      %141 = sbr.rel (%p138) target = $region32
    $region31: #{tpu_custom_call.1} parent=5 // pred_region
      %s142 = ssub.s32 %s9, 1
      %p143 = scmp.lt.s32.totalorder %s14, 1
      %s144 = scalar_select %p143, %s14, 1
      %s145 = smul.addr %s144, 112
      %s146 = smul.addr %s145, 4
      %s147 = scalar_lea.vmem %s0, %s146
      %p148 = pneg %p35
      %p149 = pneg %p32
      %p150 = pneg %p56
      %p151 = pneg %p53
      %p152 = pneg %p77
      %p153 = pneg %p74
      %p154 = pneg %p103
      %p155 = pneg %p100
      %p156 = scmp.lt.s32.totalorder %s14, 1
      %s157 = scalar_select %p156, %s14, 1
      %s158 = smul.addr %s157, 104
      %s159 = smul.addr %s158, 4
      %s160 = scalar_lea.vmem %s3, %s159
      %p161 = scmp.lt.s32.totalorder %s14, 1
      %s162 = scalar_select %p161, %s14, 1
      %s163 = smul.addr %s162, 112
      %s164 = smul.addr %s163, 4
      %s165 = scalar_lea.vmem %s0, %s164
      %p166 = scmp.lt.s32.totalorder %s14, 1
      %s167 = scalar_select %p166, %s14, 1
      %s168 = smul.addr %s167, 104
      %s169 = smul.addr %s168, 4
      %s170 = scalar_lea.vmem %s3, %s169
      %v171 = vld [vmem:[%s2] sm:$0x1]
      loop: start=0, step=1, limit=26
      $region33: #{tpu_custom_call.1} parent=31 // loop_pre_header
        _
      $region34: #{tpu_custom_call.1} parent=31 // loop_header
        %s173 = sphi 0, %s177
        %p174 = scmp.ge.s32.totalorder %s173, 26
      $region35: #{tpu_custom_call.1} parent=31 // loop_header_branch
        %176 = sbr.rel (%p174) target = $region39
      $region36: #{tpu_custom_call.1} parent=31 // loop_body
        %s178 = smul.u32 %s173, 4
        %s179 = smul.addr %s178, 4
        %s180 = scalar_lea.vmem %s165, %s179
        %v181 = vld [vmem:[%s180] sm:$0xf]
        %v182 = vld [vmem:[%s180 + $0x4] sm:$0xf]
        %v183 = vld [vmem:[%s180 + $0x8] sm:$0xf]
        %v184 = vld [vmem:[%s180 + $0xc] sm:$0x1]
        %v185 = vld [vmem:[%s1] sm:$0x1]
        %v186 = vunpack.c.l.bf16 %v181
        %v187 = vunpack.c.l.bf16 %v182
        %v188 = vunpack.c.l.bf16 %v183
        %v189 = vunpack.c.l.bf16 %v184
        %v190 = vunpack.c.l.bf16 %v185
        %192 = vset.pattern.permute.xlu0 0
        %193 = vperm.xlu0 %192, %v186
        %v194 = vpop.permute.xlu0 %193
        %197 = vset.pattern.permute.xlu0 0
        %198 = vperm.xlu0 %197, %v187
        %v199 = vpop.permute.xlu0 %198
        %202 = vset.pattern.permute.xlu0 0
        %203 = vperm.xlu0 %202, %v188
        %v204 = vpop.permute.xlu0 %203
        %207 = vset.pattern.permute.xlu0 0
        %208 = vperm.xlu0 %207, %v189
        %v209 = vpop.permute.xlu0 %208
        %v211 = vlaneseq
        %v212 = vshrl.u32 %v211, 7
        %v213 = vsub.s32 0, %v212
        %v214 = vrot.slane %v190, %v213
        %v215 = vmul.f32 %v194, %v214
        %v216 = vmul.f32 %v199, %v214
        %v217 = vmul.f32 %v204, %v214
        %v218 = vmul.f32 %v209, %v214
        %v219 = vadd.f32 %v215, 0.0
        %v220 = vadd.f32 %v216, 0.0
        %v221 = vadd.f32 %v217, 0.0
        %v222 = vadd.f32 %v218, 0.0
        %v223 = vld [vmem:[%s180 + $0xc] sm:$0x3]
        %s224 = scalar_lea.vmem %s1, 1
        %v225 = vld [vmem:[%s224] sm:$0x1]
        %v226 = vunpack.c.l.bf16 %v223
        %v227 = vunpack.c.l.bf16 %v225
        %229 = vset.pattern.permute.xlu0 0
        %230 = vperm.xlu0 %229, %v226
        %v231 = vpop.permute.xlu0 %230
        %v233 = vlaneseq
        %v234 = vshrl.u32 %v233, 7
        %v235 = vsub.s32 0, %v234
        %v236 = vrot.slane %v227, %v235
        %v237 = vmul.f32 %v194, %v236
        %v238 = vmul.f32 %v199, %v236
        %v239 = vmul.f32 %v204, %v236
        %v240 = vmul.f32 %v231, %v236
        %vm245 = vcmask 1046528
        %v246 = vrot.slane %v237, 1
        %v247 = vrot.slane %v238, 1
        %v248 = vsel %vm245, %v246, %v247
        %v249 = vrot.slane %v239, 1
        %v250 = vsel %vm245, %v247, %v249
        %v251 = vrot.slane %v240, 1
        %v252 = vsel %vm245, %v249, %v251
        %v257 = vadd.f32 %v219, %v248
        %v258 = vadd.f32 %v220, %v250
        %v259 = vadd.f32 %v221, %v252
        %v260 = vadd.f32 %v222, %v251
        %v261 = vld [vmem:[%s180] sm:$0xe]
        %s262 = scalar_lea.vmem %s1, 2
        %v263 = vld [vmem:[%s262] sm:$0x1]
        %v264 = vunpack.c.l.bf16 %v261
        %v265 = vunpack.c.l.bf16 %v263
        %267 = vset.pattern.permute.xlu0 0
        %268 = vperm.xlu0 %267, %v264
        %v269 = vpop.permute.xlu0 %268
        %v271 = vlaneseq
        %v272 = vshrl.u32 %v271, 7
        %v273 = vsub.s32 0, %v272
        %v274 = vrot.slane %v265, %v273
        %v275 = vmul.f32 %v269, %v274
        %v276 = vmul.f32 %v199, %v274
        %v277 = vmul.f32 %v204, %v274
        %v278 = vmul.f32 %v231, %v274
        %vm283 = vcmask 1045504
        %v284 = vrot.slane %v275, 2
        %v285 = vrot.slane %v276, 2
        %v286 = vsel %vm283, %v284, %v285
        %v287 = vrot.slane %v277, 2
        %v288 = vsel %vm283, %v285, %v287
        %v289 = vrot.slane %v278, 2
        %v290 = vsel %vm283, %v287, %v289
        %v295 = vadd.f32 %v257, %v286
        %v296 = vadd.f32 %v258, %v288
        %v297 = vadd.f32 %v259, %v290
        %v298 = vadd.f32 %v260, %v289
        %s299 = sadd.s32 %s173, 1
        %s300 = smul.u32 %s299, 4
        %s301 = smul.addr %s300, 4
        %s302 = scalar_lea.vmem %s165, %s301
        %v303 = vld [vmem:[%s302] sm:$0xf]
        %v304 = vld [vmem:[%s302 + $0x4] sm:$0xf]
        %v305 = vld [vmem:[%s302 + $0x8] sm:$0xf]
        %v306 = vld [vmem:[%s302 + $0xc] sm:$0x1]
        %s307 = scalar_lea.vmem %s1, 3
        %v308 = vld [vmem:[%s307] sm:$0x1]
        %v309 = vunpack.c.l.bf16 %v303
        %v310 = vunpack.c.l.bf16 %v304
        %v311 = vunpack.c.l.bf16 %v305
        %v312 = vunpack.c.l.bf16 %v306
        %v313 = vunpack.c.l.bf16 %v308
        %315 = vset.pattern.permute.xlu0 0
        %316 = vperm.xlu0 %315, %v309
        %v317 = vpop.permute.xlu0 %316
        %320 = vset.pattern.permute.xlu0 0
        %321 = vperm.xlu0 %320, %v310
        %v322 = vpop.permute.xlu0 %321
        %325 = vset.pattern.permute.xlu0 0
        %326 = vperm.xlu0 %325, %v311
        %v327 = vpop.permute.xlu0 %326
        %330 = vset.pattern.permute.xlu0 0
        %331 = vperm.xlu0 %330, %v312
        %v332 = vpop.permute.xlu0 %331
        %v334 = vlaneseq
        %v335 = vshrl.u32 %v334, 7
        %v336 = vsub.s32 0, %v335
        %v337 = vrot.slane %v313, %v336
        %v338 = vmul.f32 %v317, %v337
        %v339 = vmul.f32 %v322, %v337
        %v340 = vmul.f32 %v327, %v337
        %v341 = vmul.f32 %v332, %v337
        %v342 = vadd.f32 %v295, %v338
        %v343 = vadd.f32 %v296, %v339
        %v344 = vadd.f32 %v297, %v340
        %v345 = vadd.f32 %v298, %v341
        %v346 = vld [vmem:[%s302 + $0xc] sm:$0x3]
        %s347 = scalar_lea.vmem %s1, 4
        %v348 = vld [vmem:[%s347] sm:$0x1]
        %v349 = vunpack.c.l.bf16 %v346
        %v350 = vunpack.c.l.bf16 %v348
        %352 = vset.pattern.permute.xlu0 0
        %353 = vperm.xlu0 %352, %v349
        %v354 = vpop.permute.xlu0 %353
        %v356 = vlaneseq
        %v357 = vshrl.u32 %v356, 7
        %v358 = vsub.s32 0, %v357
        %v359 = vrot.slane %v350, %v358
        %v360 = vmul.f32 %v317, %v359
        %v361 = vmul.f32 %v322, %v359
        %v362 = vmul.f32 %v327, %v359
        %v363 = vmul.f32 %v354, %v359
        %v368 = vrot.slane %v360, 1
        %v369 = vrot.slane %v361, 1
        %v370 = vsel %vm245, %v368, %v369
        %v371 = vrot.slane %v362, 1
        %v372 = vsel %vm245, %v369, %v371
        %v373 = vrot.slane %v363, 1
        %v374 = vsel %vm245, %v371, %v373
        %v379 = vadd.f32 %v342, %v370
        %v380 = vadd.f32 %v343, %v372
        %v381 = vadd.f32 %v344, %v374
        %v382 = vadd.f32 %v345, %v373
        %v383 = vld [vmem:[%s302] sm:$0xe]
        %s384 = scalar_lea.vmem %s1, 5
        %v385 = vld [vmem:[%s384] sm:$0x1]
        %v386 = vunpack.c.l.bf16 %v383
        %v387 = vunpack.c.l.bf16 %v385
        %389 = vset.pattern.permute.xlu0 0
        %390 = vperm.xlu0 %389, %v386
        %v391 = vpop.permute.xlu0 %390
        %v393 = vlaneseq
        %v394 = vshrl.u32 %v393, 7
        %v395 = vsub.s32 0, %v394
        %v396 = vrot.slane %v387, %v395
        %v397 = vmul.f32 %v391, %v396
        %v398 = vmul.f32 %v322, %v396
        %v399 = vmul.f32 %v327, %v396
        %v400 = vmul.f32 %v354, %v396
        %v405 = vrot.slane %v397, 2
        %v406 = vrot.slane %v398, 2
        %v407 = vsel %vm283, %v405, %v406
        %v408 = vrot.slane %v399, 2
        %v409 = vsel %vm283, %v406, %v408
        %v410 = vrot.slane %v400, 2
        %v411 = vsel %vm283, %v408, %v410
        %v416 = vadd.f32 %v379, %v407
        %v417 = vadd.f32 %v380, %v409
        %v418 = vadd.f32 %v381, %v411
        %v419 = vadd.f32 %v382, %v410
        %s420 = sadd.s32 %s173, 2
        %s421 = smul.u32 %s420, 4
        %s422 = smul.addr %s421, 4
        %s423 = scalar_lea.vmem %s165, %s422
        %v424 = vld [vmem:[%s423] sm:$0xf]
        %v425 = vld [vmem:[%s423 + $0x4] sm:$0xf]
        %v426 = vld [vmem:[%s423 + $0x8] sm:$0xf]
        %v427 = vld [vmem:[%s423 + $0xc] sm:$0x1]
        %s428 = scalar_lea.vmem %s1, 6
        %v429 = vld [vmem:[%s428] sm:$0x1]
        %v430 = vunpack.c.l.bf16 %v424
        %v431 = vunpack.c.l.bf16 %v425
        %v432 = vunpack.c.l.bf16 %v426
        %v433 = vunpack.c.l.bf16 %v427
        %v434 = vunpack.c.l.bf16 %v429
        %436 = vset.pattern.permute.xlu0 0
        %437 = vperm.xlu0 %436, %v430
        %v438 = vpop.permute.xlu0 %437
        %441 = vset.pattern.permute.xlu0 0
        %442 = vperm.xlu0 %441, %v431
        %v443 = vpop.permute.xlu0 %442
        %446 = vset.pattern.permute.xlu0 0
        %447 = vperm.xlu0 %446, %v432
        %v448 = vpop.permute.xlu0 %447
        %451 = vset.pattern.permute.xlu0 0
        %452 = vperm.xlu0 %451, %v433
        %v453 = vpop.permute.xlu0 %452
        %v455 = vlaneseq
        %v456 = vshrl.u32 %v455, 7
        %v457 = vsub.s32 0, %v456
        %v458 = vrot.slane %v434, %v457
        %v459 = vmul.f32 %v438, %v458
        %v460 = vmul.f32 %v443, %v458
        %v461 = vmul.f32 %v448, %v458
        %v462 = vmul.f32 %v453, %v458
        %v463 = vadd.f32 %v416, %v459
        %v464 = vadd.f32 %v417, %v460
        %v465 = vadd.f32 %v418, %v461
        %v466 = vadd.f32 %v419, %v462
        %v467 = vld [vmem:[%s423 + $0xc] sm:$0x3]
        %s468 = scalar_lea.vmem %s1, 7
        %v469 = vld [vmem:[%s468] sm:$0x1]
        %v470 = vunpack.c.l.bf16 %v467
        %v471 = vunpack.c.l.bf16 %v469
        %473 = vset.pattern.permute.xlu0 0
        %474 = vperm.xlu0 %473, %v470
        %v475 = vpop.permute.xlu0 %474
        %v477 = vlaneseq
        %v478 = vshrl.u32 %v477, 7
        %v479 = vsub.s32 0, %v478
        %v480 = vrot.slane %v471, %v479
        %v481 = vmul.f32 %v438, %v480
        %v482 = vmul.f32 %v443, %v480
        %v483 = vmul.f32 %v448, %v480
        %v484 = vmul.f32 %v475, %v480
        %v489 = vrot.slane %v481, 1
        %v490 = vrot.slane %v482, 1
        %v491 = vsel %vm245, %v489, %v490
        %v492 = vrot.slane %v483, 1
        %v493 = vsel %vm245, %v490, %v492
        %v494 = vrot.slane %v484, 1
        %v495 = vsel %vm245, %v492, %v494
        %v500 = vadd.f32 %v463, %v491
        %v501 = vadd.f32 %v464, %v493
        %v502 = vadd.f32 %v465, %v495
        %v503 = vadd.f32 %v466, %v494
        %v504 = vld [vmem:[%s423] sm:$0xe]
        %s505 = scalar_lea.vmem %s1, 8
        %v506 = vld [vmem:[%s505] sm:$0x1]
        %v507 = vunpack.c.l.bf16 %v504
        %v508 = vunpack.c.l.bf16 %v506
        %510 = vset.pattern.permute.xlu0 0
        %511 = vperm.xlu0 %510, %v507
        %v512 = vpop.permute.xlu0 %511
        %v514 = vlaneseq
        %v515 = vshrl.u32 %v514, 7
        %v516 = vsub.s32 0, %v515
        %v517 = vrot.slane %v508, %v516
        %v518 = vmul.f32 %v512, %v517
        %v519 = vmul.f32 %v443, %v517
        %v520 = vmul.f32 %v448, %v517
        %v521 = vmul.f32 %v475, %v517
        %v526 = vrot.slane %v518, 2
        %v527 = vrot.slane %v519, 2
        %v528 = vsel %vm283, %v526, %v527
        %v529 = vrot.slane %v520, 2
        %v530 = vsel %vm283, %v527, %v529
        %v531 = vrot.slane %v521, 2
        %v532 = vsel %vm283, %v529, %v531
        %v537 = vadd.f32 %v500, %v528
        %v538 = vadd.f32 %v501, %v530
        %v539 = vadd.f32 %v502, %v532
        %v540 = vadd.f32 %v503, %v531
        %v542 = vlaneseq
        %v543 = vshrl.u32 %v542, 7
        %v544 = vsub.s32 0, %v543
        %v545 = vrot.slane %v171, %v544
        %v547 = vadd.f32 %v537, %v545
        %v548 = vadd.f32 %v538, %v545
        %v549 = vadd.f32 %v539, %v545
        %v550 = vadd.f32 %v540, %v545
        %v551 = vmax.f32 %v547, 0.0
        %v552 = vmax.f32 %v548, 0.0
        %v553 = vmax.f32 %v549, 0.0
        %v554 = vmax.f32 %v550, 0.0
        %v555 = vpack.c.bf16 %v552, %v551
        %v556 = vpack.c.bf16 %v554, %v553
        %v559 = vunpack.c.l.b16 %v555
        %v560 = vunpack.c.h.b16 %v555
        %v561 = vunpack.c.l.b16 %v556
        %v562 = vunpack.c.h.b16 %v556
        %v563 = vpack.c.b16 %v559, %v559
        %v564 = vpack.c.b16 %v560, %v560
        %v565 = vpack.c.b16 %v561, %v561
        %v566 = vpack.c.b16 %v562, %v562
        %s571 = smul.addr %s178, 4
        %s572 = scalar_lea.vmem %s170, %s571
        %vm573 = vcmask 257024
        %574 = vst.msk [vmem:[%s572] sm:$0xf] %vm573, %v563
        %575 = vst.msk [vmem:[%s572 + $0x4] sm:$0xf] %vm573, %v564
        %576 = vst.msk [vmem:[%s572 + $0x8] sm:$0xf] %vm573, %v565
        %vm577 = vcmask 253952
        %578 = vst.msk [vmem:[%s572 + $0xc] sm:$0x1] %vm577, %v566
      $region37: #{tpu_custom_call.1} parent=31 // loop_footer
        %s177 = sadd.s32 1, %s173
      $region38: #{tpu_custom_call.1} parent=31 // loop_footer_branch
        %172 = sbr.rel target = $region34
      $region39: #{tpu_custom_call.1} parent=31 // loop_exit
        _
      %p579 = scmp.lt.s32.totalorder %s14, 1
      %s580 = scalar_select %p579, %s14, 1
      %s581 = smul.addr %s580, 104
      %s582 = smul.addr %s581, 4
      %s583 = scalar_lea.vmem %s3, %s582
      // Predicated region
      $region40: #{tpu_custom_call.1} parent=31 // pred_check
        %p584 = pneg %p100
      $region41: #{tpu_custom_call.1} parent=31 // pred_check_branch
        %586 = sbr.rel (%p584) target = $region43
      $region42: #{tpu_custom_call.1} parent=31 // pred_region
        _
      $region43: #{tpu_custom_call.1} parent=31 // pred_fallthru
        _
    $region32: #{tpu_custom_call.1} parent=5 // pred_fallthru
      _
    %p587 = scmp.le.s32.totalorder 2, %s9
    // Predicated region
    $region44: #{tpu_custom_call.1} parent=5 // pred_check
      %p588 = pneg %p587
    $region45: #{tpu_custom_call.1} parent=5 // pred_check_branch
      %590 = sbr.rel (%p588) target = $region47
    $region46: #{tpu_custom_call.1} parent=5 // pred_region
      %s591 = ssub.s32 %s9, 2
      // Predicated region
      $region48: #{tpu_custom_call.1} parent=46 // pred_check
        %p592 = pneg %p106
      $region49: #{tpu_custom_call.1} parent=46 // pred_check_branch
        %594 = sbr.rel (%p592) target = $region51
      $region50: #{tpu_custom_call.1} parent=46 // pred_region
        %p595 = scmp.lt.s32.totalorder %s15, 1
        %s596 = scalar_select %p595, %s15, 1
        %s597 = smul.addr %s596, 104
        %s598 = smul.addr %s597, 4
        %s599 = scalar_lea.vmem %s3, %s598
      $region51: #{tpu_custom_call.1} parent=46 // pred_fallthru
        _
    $region47: #{tpu_custom_call.1} parent=5 // pred_fallthru
      _
  $region6: #{tpu_custom_call.1} parent=0 // loop_footer
    %s13 = sadd.s32 1, %s9
  $region7: #{tpu_custom_call.1} parent=0 // loop_footer_branch
    %8 = sbr.rel target = $region3
  $region8: #{tpu_custom_call.1} parent=0 // loop_exit
    _

</llo_original>
